<compile_context>
chip_gen: v7x
topology: tpu7x:2x2x1
jax: 0.10.0
libtpu: 0.0.40
codegen_flags: <defaults>
</compile_context>

<pallas_src>
import jax
import jax.numpy as jnp
from jax.experimental import pallas as pl
from jax.experimental.pallas import tpu as pltpu


def _round_up(x, m):
    return ((x + m - 1) // m) * m


def make_actor_kernel(phi, max_action, state_dim):
    scale = float(phi) * float(max_action)
    max_a = float(max_action)
    S = int(state_dim)

    def actor_kernel(s_ref, act_ref,
                     w1_ref, b1_ref,
                     w2_ref, b2_ref,
                     w3_ref, b3_ref,
                     out_ref):
        mm_dtype = w2_ref.dtype            # bf16 on the fast path, f32 otherwise
        s = s_ref[...]                     # [TILE_B, S]  (f32)
        act = act_ref[...]                 # [TILE_B, A]  (f32)

        # Layer 1: fused "concat" -> two accumulating MXU pushes against
        # sublane-aligned slices of the single resident w1 = [[w1_s],[w1_a]].
        h1 = (jnp.dot(s.astype(mm_dtype), w1_ref[:S, :],
                      preferred_element_type=jnp.float32)
              + jnp.dot(act.astype(mm_dtype), w1_ref[S:, :],
                        preferred_element_type=jnp.float32)
              + b1_ref[...])
        h1 = jnp.maximum(h1, 0.0)          # relu (f32, VPU)

        h2 = jnp.dot(h1.astype(mm_dtype), w2_ref[...],
                     preferred_element_type=jnp.float32) + b2_ref[...]
        h2 = jnp.maximum(h2, 0.0)          # relu

        a = jnp.dot(h2.astype(mm_dtype), w3_ref[...],
                    preferred_element_type=jnp.float32) + b3_ref[...]
        a = jnp.tanh(a) * scale            # [TILE_B, A]  bounded perturbation

        # Residual + clamp: plain VPU ops on the natural [TILE_B, A] shape
        # (no identity matmul, no padded lanes).
        out_ref[...] = jnp.clip(a + act, -max_a, max_a)

    return actor_kernel


def init_actor_params(key, state_dim, action_dim, hidden_dim):
    """PyTorch-style (uniform +-1/sqrt(fan_in)) init; weights stored [in, out]."""
    def linear(key, fan_in, fan_out):
        kw, kb = jax.random.split(key)
        bound = 1.0 / jnp.sqrt(fan_in)
        w = jax.random.uniform(kw, (fan_in, fan_out), jnp.float32, -bound, bound)
        b = jax.random.uniform(kb, (1, fan_out), jnp.float32, -bound, bound)
        return w, b

    k1, k2, k3 = jax.random.split(key, 3)
    w1, b1 = linear(k1, state_dim + action_dim, hidden_dim)
    w2, b2 = linear(k2, hidden_dim, hidden_dim)
    w3, b3 = linear(k3, hidden_dim, action_dim)
    return (w1, b1, w2, b2, w3, b3)


def prepare_actor_params(params, *, matmul_dtype=jnp.bfloat16):
    """One-time weight prep: keep w1 as a single [S+A, H] matrix, cast matmul
    weights to `matmul_dtype` (bf16 by default for the v6e/v7x MXU fast path;
    do NOT int8-quantize -- v7x MXU has no int path), biases stay f32."""
    w1, b1, w2, b2, w3, b3 = params
    return (w1.astype(matmul_dtype), b1.astype(jnp.float32),
            w2.astype(matmul_dtype), b2.astype(jnp.float32),
            w3.astype(matmul_dtype), b3.astype(jnp.float32))


def actor_forward(state, action, prepped, *, phi=0.05, max_action=1.0,
                  tile_b=2048):
    """Pallas implementation of Actor.forward(state, action)."""
    w1, b1, w2, b2, w3, b3 = prepped
    B, S = state.shape
    A = action.shape[1]
    H = w2.shape[0]

    # Batch tiling: multiple of 8 sublanes; large default tile to amortize the
    # per-grid-step overhead; keep >= 2 grid steps once B >= 16 so both v7x
    # TensorCores get work.  No input padding: Pallas masks the ragged last
    # block (grid = cdiv) instead of materializing padded HBM copies.
    tile_b = min(_round_up(tile_b, 8), _round_up(B, 8))
    if B >= 16:
        tile_b = min(tile_b, _round_up(pl.cdiv(B, 2), 8))
    grid = (pl.cdiv(B, tile_b),)
    # Note: at tile_b=2048 with H<=256 the double-buffered blocks + resident
    # weights stay well inside the scoped-VMEM defaults (16 MiB v5e, 32 MiB
    # v6e/v7x); only re-derive vmem_limit_bytes if tile_b is pushed past ~8K.

    def full(arr):
        # Constant block index => weights stay resident in VMEM across steps.
        return pl.BlockSpec(arr.shape, lambda i: (0,) * arr.ndim)

    flops = 2 * B * ((S + A) * H + H * H + H * A)
    weight_bytes = sum(int(w.size) * w.dtype.itemsize
                       for w in (w1, b1, w2, b2, w3, b3))
    bytes_accessed = (int(state.size) * 4 + int(action.size) * 4
                      + weight_bytes + B * A * 4)

    out = pl.pallas_call(
        make_actor_kernel(phi, max_action, S),
        out_shape=jax.ShapeDtypeStruct((B, A), jnp.float32),
        grid=grid,
        in_specs=[
            pl.BlockSpec((tile_b, S), lambda i: (i, 0)),     # state block
            pl.BlockSpec((tile_b, A), lambda i: (i, 0)),     # action block
            full(w1), full(b1),
            full(w2), full(b2),
            full(w3), full(b3),
        ],
        out_specs=pl.BlockSpec((tile_b, A), lambda i: (i, 0)),
        compiler_params=pltpu.CompilerParams(
            dimension_semantics=("parallel",)),
        cost_estimate=pl.CostEstimate(
            flops=flops,
            transcendentals=B * A,
            bytes_accessed=bytes_accessed),
    )(state, action, w1, b1, w2, b2, w3, b3)

    return out


def actor_ref(state, action, params, *, phi=0.05, max_action=1.0):
    """Plain-JAX reference (mirrors the PyTorch module) for correctness."""
    w1, b1, w2, b2, w3, b3 = params
    x = jnp.concatenate([state, action], axis=1)
    h1 = jnp.maximum(x @ w1 + b1, 0.0)
    h2 = jnp.maximum(h1 @ w2 + b2, 0.0)
    a = phi * max_action * jnp.tanh(h2 @ w3 + b3)
    return jnp.clip(a + action, -max_action, max_action)


if __name__ == "__main__":
    state_dim, action_dim, hidden_dim = 16, 8, 32
    phi, max_action = 0.05, 1.0

    key = jax.random.PRNGKey(0)
    k_state, k_action, k_params = jax.random.split(key, 3)
    params = init_actor_params(k_params, state_dim, action_dim, hidden_dim)

    def make_inputs(batch):
        ks, ka = jax.random.split(jax.random.fold_in(k_state, batch))
        s = jax.random.normal(ks, (batch, state_dim), jnp.float32)
        a = jnp.clip(jax.random.normal(ka, (batch, action_dim), jnp.float32),
                     -max_action, max_action)
        return s, a

    # 1) f32 matmul path, small batch (single grid step).
    state, action = make_inputs(8)
    ref = actor_ref(state, action, params, phi=phi, max_action=max_action)
    prepped_f32 = prepare_actor_params(params, matmul_dtype=jnp.float32)
    out_f32 = jax.block_until_ready(
        actor_forward(state, action, prepped_f32, phi=phi, max_action=max_action))
    assert out_f32.shape == (8, action_dim)
    assert jnp.allclose(out_f32, ref, atol=2e-3, rtol=0)

    # 2) bf16 matmul path (default prep; v6e/v7x MXU fast path, f32 accum).
    prepped_bf16 = prepare_actor_params(params)
    out_bf16 = jax.block_until_ready(
        actor_forward(state, action, prepped_bf16, phi=phi, max_action=max_action))
    assert out_bf16.shape == (8, action_dim)
    assert jnp.allclose(out_bf16, ref, atol=3e-2, rtol=0)

    # 3) Ragged batch (B not a multiple of the tile) with a >=2-step grid:
    #    exercises the no-input-padding / masked-edge path and the v7x
    #    two-TensorCore grid split.
    state_r, action_r = make_inputs(20)
    ref_r = actor_ref(state_r, action_r, params, phi=phi, max_action=max_action)
    out_r = jax.block_until_ready(
        actor_forward(state_r, action_r, prepped_f32, phi=phi,
                      max_action=max_action))
    assert out_r.shape == (20, action_dim)
    assert jnp.allclose(out_r, ref_r, atol=2e-3, rtol=0)

    print("KERNEL_OK")
</pallas_src>

<mosaic_0001>
module attributes {stable_mosaic.version = 11 : i64} {
  func.func @actor_kernel(%arg0: i32, %arg1: memref<8x16xf32, #tpu.memory_space<vmem>>, %arg2: memref<8x8xf32, #tpu.memory_space<vmem>>, %arg3: memref<24x32xf32, #tpu.memory_space<vmem>>, %arg4: memref<1x32xf32, #tpu.memory_space<vmem>>, %arg5: memref<32x32xf32, #tpu.memory_space<vmem>>, %arg6: memref<1x32xf32, #tpu.memory_space<vmem>>, %arg7: memref<32x8xf32, #tpu.memory_space<vmem>>, %arg8: memref<1x8xf32, #tpu.memory_space<vmem>>, %arg9: memref<8x8xf32, #tpu.memory_space<vmem>>) attributes {dimension_semantics = [#tpu.dimension_semantics<parallel>], iteration_bounds = array<i64: 1>, scalar_prefetch = 0 : i64, scratch_operands = 0 : i64, tpu.core_type = #tpu.core_type<tc>, window_params = [{transform_indices = @transform_0, window_bounds = array<i64: 8, 16>}, {transform_indices = @transform_1, window_bounds = array<i64: 8, 8>}, {pipeline_mode = #tpu.pipeline_mode<synchronous>, transform_indices = @transform_2, window_bounds = array<i64: 24, 32>}, {pipeline_mode = #tpu.pipeline_mode<synchronous>, transform_indices = @transform_3, window_bounds = array<i64: 1, 32>}, {pipeline_mode = #tpu.pipeline_mode<synchronous>, transform_indices = @transform_4, window_bounds = array<i64: 32, 32>}, {pipeline_mode = #tpu.pipeline_mode<synchronous>, transform_indices = @transform_5, window_bounds = array<i64: 1, 32>}, {pipeline_mode = #tpu.pipeline_mode<synchronous>, transform_indices = @transform_6, window_bounds = array<i64: 32, 8>}, {pipeline_mode = #tpu.pipeline_mode<synchronous>, transform_indices = @transform_7, window_bounds = array<i64: 1, 8>}, {transform_indices = @transform_8, window_bounds = array<i64: 8, 8>}]} {
    %c0 = arith.constant 0 : index
    %c0_0 = arith.constant 0 : index
    %0 = vector.load %arg1[%c0, %c0_0] : memref<8x16xf32, #tpu.memory_space<vmem>>, vector<8x16xf32>
    %c0_1 = arith.constant 0 : index
    %c0_2 = arith.constant 0 : index
    %1 = vector.load %arg2[%c0_1, %c0_2] : memref<8x8xf32, #tpu.memory_space<vmem>>, vector<8x8xf32>
    %c0_3 = arith.constant 0 : index
    %c0_4 = arith.constant 0 : index
    %2 = vector.load %arg3[%c0_3, %c0_4] : memref<24x32xf32, #tpu.memory_space<vmem>>, vector<16x32xf32>
    %cst = arith.constant dense<0.000000e+00> : vector<8x32xf32>
    %3 = tpu.matmul %0, %2, %cst {dimension_numbers = #tpu.dot_dimension_numbers<[1], [0], [0], [1], [0, 0, 1, 1], [], []>} : vector<8x16xf32>, vector<16x32xf32>, vector<8x32xf32> -> vector<8x32xf32>
    %c16 = arith.constant 16 : index
    %c0_5 = arith.constant 0 : index
    %4 = vector.load %arg3[%c16, %c0_5] : memref<24x32xf32, #tpu.memory_space<vmem>>, vector<8x32xf32>
    %cst_6 = arith.constant dense<0.000000e+00> : vector<8x32xf32>
    %5 = tpu.matmul %1, %4, %cst_6 {dimension_numbers = #tpu.dot_dimension_numbers<[1], [0], [0], [1], [0, 0, 1, 1], [], []>} : vector<8x8xf32>, vector<8x32xf32>, vector<8x32xf32> -> vector<8x32xf32>
    %6 = arith.addf %3, %5 : vector<8x32xf32>
    %c0_7 = arith.constant 0 : index
    %c0_8 = arith.constant 0 : index
    %7 = vector.load %arg4[%c0_7, %c0_8] : memref<1x32xf32, #tpu.memory_space<vmem>>, vector<1x32xf32>
    %8 = vector.broadcast %7 : vector<1x32xf32> to vector<8x32xf32>
    %9 = arith.addf %6, %8 : vector<8x32xf32>
    %cst_9 = arith.constant 0.000000e+00 : f32
    %10 = vector.broadcast %cst_9 : f32 to vector<8x32xf32>
    %11 = arith.maximumf %9, %10 : vector<8x32xf32>
    %c0_10 = arith.constant 0 : index
    %c0_11 = arith.constant 0 : index
    %12 = vector.load %arg5[%c0_10, %c0_11] : memref<32x32xf32, #tpu.memory_space<vmem>>, vector<32x32xf32>
    %cst_12 = arith.constant dense<0.000000e+00> : vector<8x32xf32>
    %13 = tpu.matmul %11, %12, %cst_12 {dimension_numbers = #tpu.dot_dimension_numbers<[1], [0], [0], [1], [0, 0, 1, 1], [], []>} : vector<8x32xf32>, vector<32x32xf32>, vector<8x32xf32> -> vector<8x32xf32>
    %c0_13 = arith.constant 0 : index
    %c0_14 = arith.constant 0 : index
    %14 = vector.load %arg6[%c0_13, %c0_14] : memref<1x32xf32, #tpu.memory_space<vmem>>, vector<1x32xf32>
    %15 = vector.broadcast %14 : vector<1x32xf32> to vector<8x32xf32>
    %16 = arith.addf %13, %15 : vector<8x32xf32>
    %cst_15 = arith.constant 0.000000e+00 : f32
    %17 = vector.broadcast %cst_15 : f32 to vector<8x32xf32>
    %18 = arith.maximumf %16, %17 : vector<8x32xf32>
    %c0_16 = arith.constant 0 : index
    %c0_17 = arith.constant 0 : index
    %19 = vector.load %arg7[%c0_16, %c0_17] : memref<32x8xf32, #tpu.memory_space<vmem>>, vector<32x8xf32>
    %cst_18 = arith.constant dense<0.000000e+00> : vector<8x8xf32>
    %20 = tpu.matmul %18, %19, %cst_18 {dimension_numbers = #tpu.dot_dimension_numbers<[1], [0], [0], [1], [0, 0, 1, 1], [], []>} : vector<8x32xf32>, vector<32x8xf32>, vector<8x8xf32> -> vector<8x8xf32>
    %c0_19 = arith.constant 0 : index
    %c0_20 = arith.constant 0 : index
    %21 = vector.load %arg8[%c0_19, %c0_20] : memref<1x8xf32, #tpu.memory_space<vmem>>, vector<1x8xf32>
    %22 = vector.broadcast %21 : vector<1x8xf32> to vector<8x8xf32>
    %23 = arith.addf %20, %22 : vector<8x8xf32>
    %24 = math.tanh %23 : vector<8x8xf32>
    %cst_21 = arith.constant 5.000000e-02 : f32
    %25 = vector.broadcast %cst_21 : f32 to vector<8x8xf32>
    %26 = arith.mulf %24, %25 : vector<8x8xf32>
    %27 = arith.addf %26, %1 : vector<8x8xf32>
    %cst_22 = arith.constant -1.000000e+00 : f32
    %cst_23 = arith.constant 1.000000e+00 : f32
    %28 = vector.broadcast %cst_22 : f32 to vector<8x8xf32>
    %29 = arith.maximumf %28, %27 : vector<8x8xf32>
    %30 = vector.broadcast %cst_23 : f32 to vector<8x8xf32>
    %31 = arith.minimumf %30, %29 : vector<8x8xf32>
    %c0_24 = arith.constant 0 : index
    %c0_25 = arith.constant 0 : index
    %32 = vector.load %arg9[%c0_24, %c0_25] : memref<8x8xf32, #tpu.memory_space<vmem>>, vector<8x8xf32>
    tpu.vector_store %arg9[%c0_24, %c0_25], %31 {strides = array<i32>} : memref<8x8xf32, #tpu.memory_space<vmem>>, vector<8x8xf32>,
    return
  }
  func.func @transform_0(%arg0: i32) -> (i32, i32) {
    %c0_i32 = arith.constant 0 : i32
    %c0_i32_0 = arith.constant 0 : i32
    return %arg0, %c0_i32 : i32, i32
  }
  func.func @transform_1(%arg0: i32) -> (i32, i32) {
    %c0_i32 = arith.constant 0 : i32
    %c0_i32_0 = arith.constant 0 : i32
    return %arg0, %c0_i32 : i32, i32
  }
  func.func @transform_2(%arg0: i32) -> (i32, i32) {
    %c0_i32 = arith.constant 0 : i32
    %c0_i32_0 = arith.constant 0 : i32
    %c0_i32_1 = arith.constant 0 : i32
    return %c0_i32, %c0_i32_0 : i32, i32
  }
  func.func @transform_3(%arg0: i32) -> (i32, i32) {
    %c0_i32 = arith.constant 0 : i32
    %c0_i32_0 = arith.constant 0 : i32
    %c0_i32_1 = arith.constant 0 : i32
    return %c0_i32, %c0_i32_0 : i32, i32
  }
  func.func @transform_4(%arg0: i32) -> (i32, i32) {
    %c0_i32 = arith.constant 0 : i32
    %c0_i32_0 = arith.constant 0 : i32
    %c0_i32_1 = arith.constant 0 : i32
    return %c0_i32, %c0_i32_0 : i32, i32
  }
  func.func @transform_5(%arg0: i32) -> (i32, i32) {
    %c0_i32 = arith.constant 0 : i32
    %c0_i32_0 = arith.constant 0 : i32
    %c0_i32_1 = arith.constant 0 : i32
    return %c0_i32, %c0_i32_0 : i32, i32
  }
  func.func @transform_6(%arg0: i32) -> (i32, i32) {
    %c0_i32 = arith.constant 0 : i32
    %c0_i32_0 = arith.constant 0 : i32
    %c0_i32_1 = arith.constant 0 : i32
    return %c0_i32, %c0_i32_0 : i32, i32
  }
  func.func @transform_7(%arg0: i32) -> (i32, i32) {
    %c0_i32 = arith.constant 0 : i32
    %c0_i32_0 = arith.constant 0 : i32
    %c0_i32_1 = arith.constant 0 : i32
    return %c0_i32, %c0_i32_0 : i32, i32
  }
  func.func @transform_8(%arg0: i32) -> (i32, i32) {
    %c0_i32 = arith.constant 0 : i32
    %c0_i32_0 = arith.constant 0 : i32
    return %arg0, %c0_i32 : i32, i32
  }
}

</mosaic_0001>

<llo_original>
// kernel: tpu_custom_call.1
$region0: #{tpu_custom_call.1}
  #allocation0 [shape = 'u32[]', space=smem, size = 0x4, offset = 0x4, fixed_abs, tag = 'smem constant byte address 0x4 - core index']
  #allocation1 [shape = 'u32[144,128]{1,0:T(1,128)}', space=vmem, size = 0x12000, scoped, tag = 'internal scratch']
  %s0 = inlined_call_operand.vmem [shape: f32[8,16], index: 0, kind: input, shape index: {}]
  %s1 = inlined_call_operand.vmem [shape: f32[8,8], index: 1, kind: input, shape index: {}]
  %s2 = inlined_call_operand.hbm [shape: f32[24,32], index: 2, kind: input, shape index: {}]
  %s3 = inlined_call_operand.vmem [shape: f32[1,32], index: 3, kind: input, shape index: {}]
  %s4 = inlined_call_operand.vmem [shape: f32[32,32], index: 4, kind: input, shape index: {}]
  %s5 = inlined_call_operand.vmem [shape: f32[1,32], index: 5, kind: input, shape index: {}]
  %s6 = inlined_call_operand.vmem [shape: f32[32,8], index: 6, kind: input, shape index: {}]
  %s7 = inlined_call_operand.vmem [shape: f32[1,8], index: 7, kind: input, shape index: {}]
  %s8 = inlined_call_operand.hbm [shape: f32[8,8], index: 8, kind: output, shape index: {}]
  %s9 = sld [smem:[#allocation0]]
  $region46: #{tpu_custom_call.1} parent=0
    _
  %s11 = ssub.s32 1, %s9
  %s12 = scalar_select 0, %s11, %s9
  $region1: #{tpu_custom_call.1} parent=0
    #allocation2 [shape = 'u8[12288]{0}', space=vmem, size = 0x3000, scoped, tag = 'input window, operand 2, single buffered']
    #allocation3 [shape = 's32[1]{0}', space=sflag, size = 0x4, scoped, tag = 'scoped memory for tpu_custom_call.1']
    #allocation4 [shape = 's32[1]{0}', space=sflag, size = 0x4, scoped, tag = 'scoped memory for tpu_custom_call.1']
    #allocation5 [shape = 'u8[4096]{0}', space=vmem, size = 0x1000, scoped, tag = 'output window, operand 0, single buffered']
    %13 = vsyncpa [#allocation3], 0
    %14 = vsyncpa [#allocation4], 0
    // Predicated region
    $region2: #{tpu_custom_call.1} parent=1 // pred_check
      _
    $region3: #{tpu_custom_call.1} parent=1 // pred_check_branch
      %16 = sbr.rel (0) target = $region5
    $region4: #{tpu_custom_call.1} parent=1 // pred_region
      _
    $region5: #{tpu_custom_call.1} parent=1 // pred_fallthru
      _
    // Predicated region
    $region6: #{tpu_custom_call.1} parent=1 // pred_check
      _
    $region7: #{tpu_custom_call.1} parent=1 // pred_check_branch
      %18 = sbr.rel (0) target = $region9
    $region8: #{tpu_custom_call.1} parent=1 // pred_region
      _
    $region9: #{tpu_custom_call.1} parent=1 // pred_fallthru
      _
    // Predicated region
    $region10: #{tpu_custom_call.1} parent=1 // pred_check
      _
    $region11: #{tpu_custom_call.1} parent=1 // pred_check_branch
      %20 = sbr.rel (0) target = $region13
    $region12: #{tpu_custom_call.1} parent=1 // pred_region
      %s22 = ssub.s32 384, 384
      %23 = vsyncadd [#allocation3], %s22
      %s24 = sshll.u32 [#allocation2], 4
      %s25 = int_to_ptr.vmem [resolvable:$true] %s24
      %30 = dma.hbm_to_vmem [thread:$0]  %s2, 384, %s25, [#allocation3], 128, 128, 8
    $region13: #{tpu_custom_call.1} parent=1 // pred_fallthru
      _
    // Predicated region
    $region14: #{tpu_custom_call.1} parent=1 // pred_check
      _
    $region15: #{tpu_custom_call.1} parent=1 // pred_check_branch
      %32 = sbr.rel (0) target = $region17
    $region16: #{tpu_custom_call.1} parent=1 // pred_region
      _
    $region17: #{tpu_custom_call.1} parent=1 // pred_fallthru
      _
    // Predicated region
    $region18: #{tpu_custom_call.1} parent=1 // pred_check
      _
    $region19: #{tpu_custom_call.1} parent=1 // pred_check_branch
      %34 = sbr.rel (0) target = $region21
    $region20: #{tpu_custom_call.1} parent=1 // pred_region
      _
    $region21: #{tpu_custom_call.1} parent=1 // pred_fallthru
      _
    // Predicated region
    $region22: #{tpu_custom_call.1} parent=1 // pred_check
      _
    $region23: #{tpu_custom_call.1} parent=1 // pred_check_branch
      %36 = sbr.rel (0) target = $region25
    $region24: #{tpu_custom_call.1} parent=1 // pred_region
      _
    $region25: #{tpu_custom_call.1} parent=1 // pred_fallthru
      _
    // Predicated region
    $region26: #{tpu_custom_call.1} parent=1 // pred_check
      _
    $region27: #{tpu_custom_call.1} parent=1 // pred_check_branch
      %38 = sbr.rel (0) target = $region29
    $region28: #{tpu_custom_call.1} parent=1 // pred_region
      _
    $region29: #{tpu_custom_call.1} parent=1 // pred_fallthru
      _
    // Predicated region
    $region30: #{tpu_custom_call.1} parent=1 // pred_check
      _
    $region31: #{tpu_custom_call.1} parent=1 // pred_check_branch
      %40 = sbr.rel (0) target = $region33
    $region32: #{tpu_custom_call.1} parent=1 // pred_region
      _
    $region33: #{tpu_custom_call.1} parent=1 // pred_fallthru
      _
    // Predicated region
    $region34: #{tpu_custom_call.1} parent=1 // pred_check
      _
    $region35: #{tpu_custom_call.1} parent=1 // pred_check_branch
      %42 = sbr.rel (0) target = $region37
    $region36: #{tpu_custom_call.1} parent=1 // pred_region
      %43 = dma.done [#allocation3], 384
    $region37: #{tpu_custom_call.1} parent=1 // pred_fallthru
      _
    %v44 = vld [vmem:[%s0] sm:$0xff]
    %v45 = vld [vmem:[%s1] sm:$0xff]
    %v46 = vld [vmem:[#allocation2] sm:$0xff]
    %v47 = vld [vmem:[#allocation2 + $0x8] sm:$0xff]
    %v48 = vld [vmem:[#allocation2 + $0x10] sm:$0xff]
    %vm49 = vcmask 64512
    %v51 = vsel %vm49, %v45, 0
    %53 = vmatprep.subr.mxu0 0.0
    %54 = vmatpush1.msra.mxu0 %v48
    %55 = vmatprep.subr.mxu0 0.0
    %56 = vmatpush1.msra.mxu0 0.0
    %57 = vmatprep.subr.mxu0 0.0
    %58 = vmatpush1.msra.mxu0 0.0
    %59 = vmatprep.subr.mxu0 0.0
    %60 = vmatpush1.msra.mxu0 0.0
    %61 = vmatprep.subr.mxu0 0.0
    %62 = vmatpush1.msra.mxu0 0.0
    %63 = vmatprep.subr.mxu0 0.0
    %64 = vmatpush1.msra.mxu0 0.0
    %65 = vmatprep.subr.mxu0 0.0
    %66 = vmatpush1.msra.mxu0 0.0
    %67 = vmatprep.subr.mxu0 0.0
    %68 = vmatpush1.msra.mxu0 0.0
    %69 = vmatprep.subr.mxu0 0.0
    %70 = vmatpush1.msra.mxu0 0.0
    %71 = vmatprep.subr.mxu0 0.0
    %72 = vmatpush1.msra.mxu0 0.0
    %73 = vmatprep.subr.mxu0 0.0
    %74 = vmatpush1.msra.mxu0 0.0
    %75 = vmatprep.subr.mxu0 0.0
    %76 = vmatpush1.msra.mxu0 0.0
    %77 = vmatprep.subr.mxu0 0.0
    %78 = vmatpush1.msra.mxu0 0.0
    %79 = vmatprep.subr.mxu0 0.0
    %80 = vmatpush1.msra.mxu0 0.0
    %81 = vmatprep.subr.mxu0 0.0
    %82 = vmatpush1.msra.mxu0 0.0
    %83 = vmatprep.subr.mxu0 0.0
    %84 = vmatpush1.msra.mxu0 0.0
    %85 = vmatprep.subr.mxu0 0.0
    %86 = vmatpush1.msra.mxu0 0.0
    %87 = vmatprep.subr.mxu0 0.0
    %88 = vmatpush1.msra.mxu0 0.0
    %89 = vmatprep.subr.mxu0 0.0
    %90 = vmatpush1.msra.mxu0 0.0
    %91 = vmatprep.subr.mxu0 0.0
    %92 = vmatpush1.msra.mxu0 0.0
    %93 = vmatprep.subr.mxu0 0.0
    %94 = vmatpush1.msra.mxu0 0.0
    %95 = vmatprep.subr.mxu0 0.0
    %96 = vmatpush1.msra.mxu0 0.0
    %97 = vmatprep.subr.mxu0 0.0
    %98 = vmatpush1.msra.mxu0 0.0
    %99 = vmatprep.subr.mxu0 0.0
    %100 = vmatpush1.msra.mxu0 0.0
    %101 = vmatprep.subr.mxu0 0.0
    %102 = vmatpush1.msra.mxu0 0.0
    %103 = vmatprep.subr.mxu0 0.0
    %104 = vmatpush1.msra.mxu0 0.0
    %105 = vmatprep.subr.mxu0 0.0
    %106 = vmatpush1.msra.mxu0 0.0
    %107 = vmatprep.subr.mxu0 0.0
    %108 = vmatpush1.msra.mxu0 0.0
    %109 = vmatprep.subr.mxu0 0.0
    %110 = vmatpush1.msra.mxu0 0.0
    %111 = vmatprep.subr.mxu0 0.0
    %112 = vmatpush1.msra.mxu0 0.0
    %113 = vmatprep.subr.mxu0 0.0
    %114 = vmatpush1.msra.mxu0 0.0
    %115 = vmatprep.subr.mxu0 0.0
    %116 = vmatpush1.msra.mxu0 0.0
    %117 = vmatprep.mubr.f32.mxu0 0.0
    %118 = vmatmul.mubr.f32.gmra.mrb[0].mxu0 %v51
    %v119 = vpop.f32.mrb[0].mxu0
    %v120 = vadd.f32 0.0, %v119
    %v121 = vpop.f32.mrb[0].mxu0
    %122 = vdwg.mxu0
    %vm123 = vcmask 130048
    %v125 = vsel %vm123, %v44, 0
    %127 = vmatprep.subr.mxu0 0.0
    %128 = vmatpush1.msra.mxu0 %v46
    %129 = vmatprep.subr.mxu0 0.0
    %130 = vmatpush1.msra.mxu0 %v47
    %131 = vmatprep.subr.mxu0 0.0
    %132 = vmatpush1.msra.mxu0 0.0
    %133 = vmatprep.subr.mxu0 0.0
    %134 = vmatpush1.msra.mxu0 0.0
    %135 = vmatprep.subr.mxu0 0.0
    %136 = vmatpush1.msra.mxu0 0.0
    %137 = vmatprep.subr.mxu0 0.0
    %138 = vmatpush1.msra.mxu0 0.0
    %139 = vmatprep.subr.mxu0 0.0
    %140 = vmatpush1.msra.mxu0 0.0
    %141 = vmatprep.subr.mxu0 0.0
    %142 = vmatpush1.msra.mxu0 0.0
    %143 = vmatprep.subr.mxu0 0.0
    %144 = vmatpush1.msra.mxu0 0.0
    %145 = vmatprep.subr.mxu0 0.0
    %146 = vmatpush1.msra.mxu0 0.0
    %147 = vmatprep.subr.mxu0 0.0
    %148 = vmatpush1.msra.mxu0 0.0
    %149 = vmatprep.subr.mxu0 0.0
    %150 = vmatpush1.msra.mxu0 0.0
    %151 = vmatprep.subr.mxu0 0.0
    %152 = vmatpush1.msra.mxu0 0.0
    %153 = vmatprep.subr.mxu0 0.0
    %154 = vmatpush1.msra.mxu0 0.0
    %155 = vmatprep.subr.mxu0 0.0
    %156 = vmatpush1.msra.mxu0 0.0
    %157 = vmatprep.subr.mxu0 0.0
    %158 = vmatpush1.msra.mxu0 0.0
    %159 = vmatprep.subr.mxu0 0.0
    %160 = vmatpush1.msra.mxu0 0.0
    %161 = vmatprep.subr.mxu0 0.0
    %162 = vmatpush1.msra.mxu0 0.0
    %163 = vmatprep.subr.mxu0 0.0
    %164 = vmatpush1.msra.mxu0 0.0
    %165 = vmatprep.subr.mxu0 0.0
    %166 = vmatpush1.msra.mxu0 0.0
    %167 = vmatprep.subr.mxu0 0.0
    %168 = vmatpush1.msra.mxu0 0.0
    %169 = vmatprep.subr.mxu0 0.0
    %170 = vmatpush1.msra.mxu0 0.0
    %171 = vmatprep.subr.mxu0 0.0
    %172 = vmatpush1.msra.mxu0 0.0
    %173 = vmatprep.subr.mxu0 0.0
    %174 = vmatpush1.msra.mxu0 0.0
    %175 = vmatprep.subr.mxu0 0.0
    %176 = vmatpush1.msra.mxu0 0.0
    %177 = vmatprep.subr.mxu0 0.0
    %178 = vmatpush1.msra.mxu0 0.0
    %179 = vmatprep.subr.mxu0 0.0
    %180 = vmatpush1.msra.mxu0 0.0
    %181 = vmatprep.subr.mxu0 0.0
    %182 = vmatpush1.msra.mxu0 0.0
    %183 = vmatprep.subr.mxu0 0.0
    %184 = vmatpush1.msra.mxu0 0.0
    %185 = vmatprep.subr.mxu0 0.0
    %186 = vmatpush1.msra.mxu0 0.0
    %187 = vmatprep.subr.mxu0 0.0
    %188 = vmatpush1.msra.mxu0 0.0
    %189 = vmatprep.subr.mxu0 0.0
    %190 = vmatpush1.msra.mxu0 0.0
    %191 = vmatprep.mubr.f32.mxu0 0.0
    %192 = vmatmul.mubr.f32.gmra.mrb[0].mxu0 %v125
    %v193 = vpop.f32.mrb[0].mxu0
    %v194 = vadd.f32 %v120, %v193
    %v195 = vpop.f32.mrb[0].mxu0
    %196 = vdwg.mxu0
    %v197 = vld [vmem:[%s3] sm:$0x1]
    %v199 = vlaneseq
    %v200 = vshrl.u32 %v199, 7
    %v201 = vsub.s32 0, %v200
    %v202 = vrot.slane %v197, %v201
    %v204 = vadd.f32 %v194, %v202
    %v205 = vmax.f32 %v204, 0.0
    %v206 = vld [vmem:[%s4] sm:$0xff]
    %v207 = vld [vmem:[%s4 + $0x8] sm:$0xff]
    %v208 = vld [vmem:[%s4 + $0x10] sm:$0xff]
    %v209 = vld [vmem:[%s4 + $0x18] sm:$0xff]
    %v210 = vld [vmem:[%s5] sm:$0x1]
    %v212 = vlaneseq
    %v213 = vshrl.u32 %v212, 7
    %v214 = vsub.s32 0, %v213
    %v215 = vrot.slane %v210, %v214
    %vm217 = vcmask 261120
    %v219 = vsel %vm217, %v205, 0
    %221 = vmatprep.subr.mxu0 0.0
    %222 = vmatpush1.msra.mxu0 %v206
    %223 = vmatprep.subr.mxu0 0.0
    %224 = vmatpush1.msra.mxu0 %v207
    %225 = vmatprep.subr.mxu0 0.0
    %226 = vmatpush1.msra.mxu0 %v208
    %227 = vmatprep.subr.mxu0 0.0
    %228 = vmatpush1.msra.mxu0 %v209
    %229 = vmatprep.subr.mxu0 0.0
    %230 = vmatpush1.msra.mxu0 0.0
    %231 = vmatprep.subr.mxu0 0.0
    %232 = vmatpush1.msra.mxu0 0.0
    %233 = vmatprep.subr.mxu0 0.0
    %234 = vmatpush1.msra.mxu0 0.0
    %235 = vmatprep.subr.mxu0 0.0
    %236 = vmatpush1.msra.mxu0 0.0
    %237 = vmatprep.subr.mxu0 0.0
    %238 = vmatpush1.msra.mxu0 0.0
    %239 = vmatprep.subr.mxu0 0.0
    %240 = vmatpush1.msra.mxu0 0.0
    %241 = vmatprep.subr.mxu0 0.0
    %242 = vmatpush1.msra.mxu0 0.0
    %243 = vmatprep.subr.mxu0 0.0
    %244 = vmatpush1.msra.mxu0 0.0
    %245 = vmatprep.subr.mxu0 0.0
    %246 = vmatpush1.msra.mxu0 0.0
    %247 = vmatprep.subr.mxu0 0.0
    %248 = vmatpush1.msra.mxu0 0.0
    %249 = vmatprep.subr.mxu0 0.0
    %250 = vmatpush1.msra.mxu0 0.0
    %251 = vmatprep.subr.mxu0 0.0
    %252 = vmatpush1.msra.mxu0 0.0
    %253 = vmatprep.subr.mxu0 0.0
    %254 = vmatpush1.msra.mxu0 0.0
    %255 = vmatprep.subr.mxu0 0.0
    %256 = vmatpush1.msra.mxu0 0.0
    %257 = vmatprep.subr.mxu0 0.0
    %258 = vmatpush1.msra.mxu0 0.0
    %259 = vmatprep.subr.mxu0 0.0
    %260 = vmatpush1.msra.mxu0 0.0
    %261 = vmatprep.subr.mxu0 0.0
    %262 = vmatpush1.msra.mxu0 0.0
    %263 = vmatprep.subr.mxu0 0.0
    %264 = vmatpush1.msra.mxu0 0.0
    %265 = vmatprep.subr.mxu0 0.0
    %266 = vmatpush1.msra.mxu0 0.0
    %267 = vmatprep.subr.mxu0 0.0
    %268 = vmatpush1.msra.mxu0 0.0
    %269 = vmatprep.subr.mxu0 0.0
    %270 = vmatpush1.msra.mxu0 0.0
    %271 = vmatprep.subr.mxu0 0.0
    %272 = vmatpush1.msra.mxu0 0.0
    %273 = vmatprep.subr.mxu0 0.0
    %274 = vmatpush1.msra.mxu0 0.0
    %275 = vmatprep.subr.mxu0 0.0
    %276 = vmatpush1.msra.mxu0 0.0
    %277 = vmatprep.subr.mxu0 0.0
    %278 = vmatpush1.msra.mxu0 0.0
    %279 = vmatprep.subr.mxu0 0.0
    %280 = vmatpush1.msra.mxu0 0.0
    %281 = vmatprep.subr.mxu0 0.0
    %282 = vmatpush1.msra.mxu0 0.0
    %283 = vmatprep.subr.mxu0 0.0
    %284 = vmatpush1.msra.mxu0 0.0
    %285 = vmatprep.mubr.f32.mxu0 0.0
    %286 = vmatmul.mubr.f32.gmra.mrb[0].mxu0 %v219
    %v287 = vpop.f32.mrb[0].mxu0
    %v288 = vadd.f32 %v215, %v287
    %v289 = vpop.f32.mrb[0].mxu0
    %290 = vdwg.mxu0
    %v291 = vmax.f32 %v288, 0.0
    %v292 = vld [vmem:[%s6] sm:$0xff]
    %v293 = vld [vmem:[%s6 + $0x8] sm:$0xff]
    %v294 = vld [vmem:[%s6 + $0x10] sm:$0xff]
    %v295 = vld [vmem:[%s6 + $0x18] sm:$0xff]
    %v296 = vld [vmem:[%s7] sm:$0x1]
    %v298 = vlaneseq
    %v299 = vshrl.u32 %v298, 7
    %v300 = vsub.s32 0, %v299
    %v301 = vrot.slane %v296, %v300
    %v304 = vsel %vm217, %v291, 0
    %306 = vmatprep.subr.mxu0 0.0
    %307 = vmatpush1.msra.mxu0 %v292
    %308 = vmatprep.subr.mxu0 0.0
    %309 = vmatpush1.msra.mxu0 %v293
    %310 = vmatprep.subr.mxu0 0.0
    %311 = vmatpush1.msra.mxu0 %v294
    %312 = vmatprep.subr.mxu0 0.0
    %313 = vmatpush1.msra.mxu0 %v295
    %314 = vmatprep.subr.mxu0 0.0
    %315 = vmatpush1.msra.mxu0 0.0
    %316 = vmatprep.subr.mxu0 0.0
    %317 = vmatpush1.msra.mxu0 0.0
    %318 = vmatprep.subr.mxu0 0.0
    %319 = vmatpush1.msra.mxu0 0.0
    %320 = vmatprep.subr.mxu0 0.0
    %321 = vmatpush1.msra.mxu0 0.0
    %322 = vmatprep.subr.mxu0 0.0
    %323 = vmatpush1.msra.mxu0 0.0
    %324 = vmatprep.subr.mxu0 0.0
    %325 = vmatpush1.msra.mxu0 0.0
    %326 = vmatprep.subr.mxu0 0.0
    %327 = vmatpush1.msra.mxu0 0.0
    %328 = vmatprep.subr.mxu0 0.0
    %329 = vmatpush1.msra.mxu0 0.0
    %330 = vmatprep.subr.mxu0 0.0
    %331 = vmatpush1.msra.mxu0 0.0
    %332 = vmatprep.subr.mxu0 0.0
    %333 = vmatpush1.msra.mxu0 0.0
    %334 = vmatprep.subr.mxu0 0.0
    %335 = vmatpush1.msra.mxu0 0.0
    %336 = vmatprep.subr.mxu0 0.0
    %337 = vmatpush1.msra.mxu0 0.0
    %338 = vmatprep.subr.mxu0 0.0
    %339 = vmatpush1.msra.mxu0 0.0
    %340 = vmatprep.subr.mxu0 0.0
    %341 = vmatpush1.msra.mxu0 0.0
    %342 = vmatprep.subr.mxu0 0.0
    %343 = vmatpush1.msra.mxu0 0.0
    %344 = vmatprep.subr.mxu0 0.0
    %345 = vmatpush1.msra.mxu0 0.0
    %346 = vmatprep.subr.mxu0 0.0
    %347 = vmatpush1.msra.mxu0 0.0
    %348 = vmatprep.subr.mxu0 0.0
    %349 = vmatpush1.msra.mxu0 0.0
    %350 = vmatprep.subr.mxu0 0.0
    %351 = vmatpush1.msra.mxu0 0.0
    %352 = vmatprep.subr.mxu0 0.0
    %353 = vmatpush1.msra.mxu0 0.0
    %354 = vmatprep.subr.mxu0 0.0
    %355 = vmatpush1.msra.mxu0 0.0
    %356 = vmatprep.subr.mxu0 0.0
    %357 = vmatpush1.msra.mxu0 0.0
    %358 = vmatprep.subr.mxu0 0.0
    %359 = vmatpush1.msra.mxu0 0.0
    %360 = vmatprep.subr.mxu0 0.0
    %361 = vmatpush1.msra.mxu0 0.0
    %362 = vmatprep.subr.mxu0 0.0
    %363 = vmatpush1.msra.mxu0 0.0
    %364 = vmatprep.subr.mxu0 0.0
    %365 = vmatpush1.msra.mxu0 0.0
    %366 = vmatprep.subr.mxu0 0.0
    %367 = vmatpush1.msra.mxu0 0.0
    %368 = vmatprep.subr.mxu0 0.0
    %369 = vmatpush1.msra.mxu0 0.0
    %370 = vmatprep.mubr.f32.mxu0 0.0
    %371 = vmatmul.mubr.f32.gmra.mrb[0].mxu0 %v304
    %v372 = vpop.f32.mrb[0].mxu0
    %v373 = vadd.f32 %v301, %v372
    %v374 = vpop.f32.mrb[0].mxu0
    %375 = vdwg.mxu0
    %v376 = vtanh.pop %v373
    %v377 = vmul.f32 %v376, 0.05
    %v378 = vadd.f32 %v377, %v45
    %v379 = vmax.f32 %v378, -1.0
    %v380 = vmin.f32 %v379, 1.0
    %381 = vst.msk [vmem:[#allocation5] sm:$0xff] %vm49, %v380
    // Predicated region
    $region38: #{tpu_custom_call.1} parent=1 // pred_check
      _
    $region39: #{tpu_custom_call.1} parent=1 // pred_check_branch
      %383 = sbr.rel (0) target = $region41
    $region40: #{tpu_custom_call.1} parent=1 // pred_region
      %s385 = ssub.s32 128, 128
      %386 = vsyncadd [#allocation4], %s385
      %s388 = sshll.u32 [#allocation5], 4
      %s389 = int_to_ptr.vmem [resolvable:$true] %s388
      %391 = dma.vmem_to_hbm [thread:$0]  %s389, 128, %s8, [#allocation4]
    $region41: #{tpu_custom_call.1} parent=1 // pred_fallthru
      _
    // Predicated region
    $region42: #{tpu_custom_call.1} parent=1 // pred_check
      _
    $region43: #{tpu_custom_call.1} parent=1 // pred_check_branch
      %393 = sbr.rel (0) target = $region45
    $region44: #{tpu_custom_call.1} parent=1 // pred_region
      %394 = dma.done [#allocation4], 128
    $region45: #{tpu_custom_call.1} parent=1 // pred_fallthru
      _
    %395 = vsyncpa [#allocation3], 1
    %396 = vsyncpa [#allocation4], 1

</llo_original>
